<compile_context>
chip_gen: v6e
topology: v6e:2x2x1
jax: 0.10.0
libtpu: 0.0.40
codegen_flags: <defaults>
</compile_context>

<pallas_src>
import math

import jax
import jax.numpy as jnp
from jax.experimental import pallas as pl
from jax.experimental.pallas import tpu as pltpu


def _round_up(v, m):
    return ((v + m - 1) // m) * m


# ---------------------------------------------------------------------------
# Stage 1 kernel:  support = x @ weight   (row-tiled over flattened batch*nodes)
# ---------------------------------------------------------------------------
def _xw_kernel(x_ref, w_ref, o_ref):
    # x_ref: (TS, F_in)   w_ref: (F_in, F_out_p)   o_ref: (TS, F_out_p)
    o_ref[...] = jnp.dot(
        x_ref[...], w_ref[...], preferred_element_type=jnp.float32
    ).astype(o_ref.dtype)


# ---------------------------------------------------------------------------
# Stage 2 kernel:  out = adj @ support + bias   (tiled contraction, f32 acc)
# ---------------------------------------------------------------------------
def _adj_support_kernel(adj_ref, s_ref, b_ref, o_ref, acc_ref):
    # adj_ref: (1, TM, TK)   s_ref: (1, TK, F_out_p)   b_ref: (1, 1, F_out_p)
    # o_ref:   (1, TM, F_out_p)   acc_ref: (TM, F_out_p) f32 scratch
    k = pl.program_id(2)

    @pl.when(k == 0)
    def _():
        acc_ref[...] = jnp.zeros_like(acc_ref)

    acc_ref[...] += jnp.dot(
        adj_ref[0], s_ref[0], preferred_element_type=jnp.float32
    )

    @pl.when(k == pl.num_programs(2) - 1)
    def _():
        o_ref[0] = (acc_ref[...] + b_ref[0]).astype(o_ref.dtype)


def graph_convolution(x, adj, weight, bias=None, *, compute_dtype=None):
    """Pallas GCN layer forward.

    x:      (B, N, F_in)
    adj:    (B, N, N)
    weight: (F_in, F_out)
    bias:   (1, 1, F_out) or None
    compute_dtype: dtype fed to the MXU (e.g. jnp.bfloat16 on v6e/v7x).
                   Defaults to x.dtype (exact PyTorch-matching numerics).
    returns (B, N, F_out) in x.dtype
    """
    B, N, F_in = x.shape
    F_out = weight.shape[1]
    out_dtype = x.dtype
    if compute_dtype is None:
        compute_dtype = x.dtype
    compute_dtype = jnp.dtype(compute_dtype)

    # ---- tile sizes (VMEM-independent of N, safe on v5e/v6e/v7x) ----------
    TM = min(256, _round_up(N, 8))       # output-row tile (sublane dim)
    TK = min(512, _round_up(N, 128))     # contraction tile (lane dim of adj)
    F_out_p = _round_up(F_out, 128)      # lane-dense output width

    N_rows = _round_up(N, TM)            # padded output-row extent
    N_cols = _round_up(N, TK)            # padded contraction extent

    # ---- wrapper-side zero padding + dtype casts (layout plumbing) --------
    x_p = jnp.pad(x, ((0, 0), (0, N_cols - N), (0, 0))).astype(compute_dtype)
    adj_p = jnp.pad(
        adj, ((0, 0), (0, N_rows - N), (0, N_cols - N))
    ).astype(compute_dtype)
    w_p = jnp.pad(weight, ((0, 0), (0, F_out_p - F_out))).astype(compute_dtype)
    if bias is None:
        b_p = jnp.zeros((1, 1, F_out_p), jnp.float32)
    else:
        b_p = jnp.pad(
            bias, ((0, 0), (0, 0), (0, F_out_p - F_out))
        ).astype(jnp.float32)

    itemsize = compute_dtype.itemsize

    # ---- stage 1: support = x @ W  (batch packed into rows) ---------------
    x2d = x_p.reshape(B * N_cols, F_in)
    total_rows = B * N_cols                       # multiple of 128 by construction
    TS = next(t for t in (512, 256, 128) if total_rows % t == 0)

    support2d = pl.pallas_call(
        _xw_kernel,
        out_shape=jax.ShapeDtypeStruct((total_rows, F_out_p), compute_dtype),
        grid_spec=pltpu.PrefetchScalarGridSpec(
            num_scalar_prefetch=0,
            grid=(total_rows // TS,),
            in_specs=[
                pl.BlockSpec((TS, F_in), lambda i: (i, 0)),
                pl.BlockSpec((F_in, F_out_p), lambda i: (0, 0)),  # weight resident
            ],
            out_specs=pl.BlockSpec((TS, F_out_p), lambda i: (i, 0)),
        ),
        compiler_params=pltpu.CompilerParams(
            dimension_semantics=("parallel",)
        ),
        cost_estimate=pl.CostEstimate(
            flops=2 * total_rows * F_in * F_out_p,
            transcendentals=0,
            bytes_accessed=(
                total_rows * F_in * itemsize
                + F_in * F_out_p * itemsize
                + total_rows * F_out_p * itemsize
            ),
        ),
    )(x2d, w_p)
    support = support2d.reshape(B, N_cols, F_out_p)

    # ---- stage 2: out = adj @ support + bias -------------------------------
    grid = (B, N_rows // TM, N_cols // TK)

    out_p = pl.pallas_call(
        _adj_support_kernel,
        out_shape=jax.ShapeDtypeStruct((B, N_rows, F_out_p), out_dtype),
        grid_spec=pltpu.PrefetchScalarGridSpec(
            num_scalar_prefetch=0,
            grid=grid,
            in_specs=[
                pl.BlockSpec((1, TM, TK), lambda b, i, k: (b, i, k)),
                pl.BlockSpec((1, TK, F_out_p), lambda b, i, k: (b, k, 0)),
                pl.BlockSpec((1, 1, F_out_p), lambda b, i, k: (0, 0, 0)),
            ],
            out_specs=pl.BlockSpec((1, TM, F_out_p), lambda b, i, k: (b, i, 0)),
            scratch_shapes=[pltpu.VMEM((TM, F_out_p), jnp.float32)],
        ),
        compiler_params=pltpu.CompilerParams(
            dimension_semantics=("parallel", "parallel", "arbitrary")
        ),
        cost_estimate=pl.CostEstimate(
            flops=2 * B * N_rows * N_cols * F_out_p,
            transcendentals=0,
            bytes_accessed=(
                B * N_rows * N_cols * itemsize                          # adj
                + (N_rows // TM) * B * N_cols * F_out_p * itemsize      # support re-reads
                + B * N_rows * F_out_p * jnp.dtype(out_dtype).itemsize  # out
            ),
        ),
    )(adj_p, support, b_p)

    # Strip wrapper-side padding.
    return out_p[:, :N, :F_out]


def init_params(key, in_features, out_features, use_bias):
    """Deterministic init matching reset_parameters(): uniform(-stdv, stdv),
    stdv = 1/sqrt(out_features)."""
    stdv = 1.0 / math.sqrt(out_features)
    kw, kb = jax.random.split(key)
    weight = jax.random.uniform(
        kw, (in_features, out_features), jnp.float32, minval=-stdv, maxval=stdv
    )
    bias = None
    if use_bias:
        bias = jax.random.uniform(
            kb, (1, 1, out_features), jnp.float32, minval=-stdv, maxval=stdv
        )
    return weight, bias


if __name__ == "__main__":
    key = jax.random.PRNGKey(0)
    k_x, k_adj, k_p = jax.random.split(key, 3)

    # Small shapes: batch=2 graphs, 16 nodes, 32 in-features, 64 out-features.
    B, N, F_in, F_out = 2, 16, 32, 64

    x = jax.random.normal(k_x, (B, N, F_in), dtype=jnp.float32)
    adj = jax.random.uniform(k_adj, (B, N, N), dtype=jnp.float32)

    ok = True
    for use_bias in (False, True):
        weight, bias = init_params(k_p, F_in, F_out, use_bias)

        # Pure-JAX reference (same semantics as the PyTorch forward).
        out_ref = jnp.matmul(adj, jnp.matmul(x, weight))
        if use_bias:
            out_ref = out_ref + bias

        # Exact f32 path (default, matches PyTorch numerics).
        out_f32 = jax.block_until_ready(graph_convolution(x, adj, weight, bias))
        if not jnp.allclose(out_f32, out_ref, atol=1e-4, rtol=1e-4):
            ok = False

        # bf16 MXU fast path (v6e/v7x) -- looser tolerance due to bf16 inputs.
        out_bf16 = jax.block_until_ready(
            graph_convolution(x, adj, weight, bias, compute_dtype=jnp.bfloat16)
        )
        if not jnp.allclose(out_bf16, out_ref, atol=5e-2, rtol=5e-2):
            ok = False

    if ok:
        print("KERNEL_OK")
</pallas_src>

<mosaic_0001>
module attributes {stable_mosaic.version = 11 : i64} {
  func.func @_xw_kernel(%arg0: i32, %arg1: memref<256x32xf32, #tpu.memory_space<vmem>>, %arg2: memref<32x128xf32, #tpu.memory_space<vmem>>, %arg3: memref<256x128xf32, #tpu.memory_space<vmem>>) attributes {dimension_semantics = [#tpu.dimension_semantics<parallel>], iteration_bounds = array<i64: 1>, scalar_prefetch = 0 : i64, scratch_operands = 0 : i64, tpu.core_type = #tpu.core_type<tc>, window_params = [{transform_indices = @transform_0, window_bounds = array<i64: 256, 32>}, {pipeline_mode = #tpu.pipeline_mode<synchronous>, transform_indices = @transform_1, window_bounds = array<i64: 32, 128>}, {transform_indices = @transform_2, window_bounds = array<i64: 256, 128>}]} {
    %c0 = arith.constant 0 : index
    %c0_0 = arith.constant 0 : index
    %0 = vector.load %arg1[%c0, %c0_0] : memref<256x32xf32, #tpu.memory_space<vmem>>, vector<256x32xf32>
    %c0_1 = arith.constant 0 : index
    %c0_2 = arith.constant 0 : index
    %1 = vector.load %arg2[%c0_1, %c0_2] : memref<32x128xf32, #tpu.memory_space<vmem>>, vector<32x128xf32>
    %cst = arith.constant dense<0.000000e+00> : vector<256x128xf32>
    %2 = tpu.matmul %0, %1, %cst {dimension_numbers = #tpu.dot_dimension_numbers<[1], [0], [0], [1], [0, 0, 1, 1], [], []>} : vector<256x32xf32>, vector<32x128xf32>, vector<256x128xf32> -> vector<256x128xf32>
    %c0_3 = arith.constant 0 : index
    %c0_4 = arith.constant 0 : index
    %3 = vector.load %arg3[%c0_3, %c0_4] : memref<256x128xf32, #tpu.memory_space<vmem>>, vector<256x128xf32>
    tpu.vector_store %arg3[%c0_3, %c0_4], %2 {strides = array<i32>} : memref<256x128xf32, #tpu.memory_space<vmem>>, vector<256x128xf32>,
    return
  }
  func.func @transform_0(%arg0: i32) -> (i32, i32) {
    %c0_i32 = arith.constant 0 : i32
    %c0_i32_0 = arith.constant 0 : i32
    return %arg0, %c0_i32 : i32, i32
  }
  func.func @transform_1(%arg0: i32) -> (i32, i32) {
    %c0_i32 = arith.constant 0 : i32
    %c0_i32_0 = arith.constant 0 : i32
    %c0_i32_1 = arith.constant 0 : i32
    return %c0_i32, %c0_i32_0 : i32, i32
  }
  func.func @transform_2(%arg0: i32) -> (i32, i32) {
    %c0_i32 = arith.constant 0 : i32
    %c0_i32_0 = arith.constant 0 : i32
    return %arg0, %c0_i32 : i32, i32
  }
}

</mosaic_0001>

<llo_original>
// kernel: tpu_custom_call.1
$region0: #{tpu_custom_call.1}
  #allocation0 [shape = 'u32[]', space=smem, size = 0x4, offset = 0x4, fixed_abs, tag = 'smem constant byte address 0x4 - core index']
  #allocation1 [shape = 'u32[144,128]{1,0:T(1,128)}', space=vmem, size = 0x12000, scoped, tag = 'internal scratch']
  %s0 = inlined_call_operand.vmem [shape: f32[256,32], index: 0, kind: input, shape index: {}]
  %s1 = inlined_call_operand.vmem [shape: f32[32,128], index: 1, kind: input, shape index: {}]
  %s2 = inlined_call_operand.hbm [shape: f32[256,128], index: 2, kind: output, shape index: {}]
  %s3 = sld [smem:[#allocation0]]
  $region18: #{tpu_custom_call.1} parent=0
    _
  %s5 = ssub.s32 1, %s3
  %s6 = scalar_select 0, %s5, %s3
  $region1: #{tpu_custom_call.1} parent=0
    #allocation2 [shape = 'u8[131072]{0}', space=vmem, size = 0x20000, scoped, tag = 'output window, operand 0, single buffered']
    #allocation3 [shape = 's32[1]{0}', space=sflag, size = 0x4, scoped, tag = 'scoped memory for tpu_custom_call.1']
    %7 = vsyncpa [#allocation3], 0
    // Predicated region
    $region2: #{tpu_custom_call.1} parent=1 // pred_check
      _
    $region3: #{tpu_custom_call.1} parent=1 // pred_check_branch
      %9 = sbr.rel (0) target = $region5
    $region4: #{tpu_custom_call.1} parent=1 // pred_region
      _
    $region5: #{tpu_custom_call.1} parent=1 // pred_fallthru
      _
    // Predicated region
    $region6: #{tpu_custom_call.1} parent=1 // pred_check
      _
    $region7: #{tpu_custom_call.1} parent=1 // pred_check_branch
      %11 = sbr.rel (0) target = $region9
    $region8: #{tpu_custom_call.1} parent=1 // pred_region
      _
    $region9: #{tpu_custom_call.1} parent=1 // pred_fallthru
      _
    %v12 = vld [vmem:[%s0] sm:$0xff]
    %v13 = vld [vmem:[%s0 + $0x8] sm:$0xff]
    %v14 = vld [vmem:[%s0 + $0x10] sm:$0xff]
    %v15 = vld [vmem:[%s0 + $0x18] sm:$0xff]
    %v16 = vld [vmem:[%s0 + $0x20] sm:$0xff]
    %v17 = vld [vmem:[%s0 + $0x28] sm:$0xff]
    %v18 = vld [vmem:[%s0 + $0x30] sm:$0xff]
    %v19 = vld [vmem:[%s0 + $0x38] sm:$0xff]
    %v20 = vld [vmem:[%s0 + $0x40] sm:$0xff]
    %v21 = vld [vmem:[%s0 + $0x48] sm:$0xff]
    %v22 = vld [vmem:[%s0 + $0x50] sm:$0xff]
    %v23 = vld [vmem:[%s0 + $0x58] sm:$0xff]
    %v24 = vld [vmem:[%s0 + $0x60] sm:$0xff]
    %v25 = vld [vmem:[%s0 + $0x68] sm:$0xff]
    %v26 = vld [vmem:[%s0 + $0x70] sm:$0xff]
    %v27 = vld [vmem:[%s0 + $0x78] sm:$0xff]
    %v28 = vld [vmem:[%s0 + $0x80] sm:$0xff]
    %v29 = vld [vmem:[%s0 + $0x88] sm:$0xff]
    %v30 = vld [vmem:[%s0 + $0x90] sm:$0xff]
    %v31 = vld [vmem:[%s0 + $0x98] sm:$0xff]
    %v32 = vld [vmem:[%s0 + $0xa0] sm:$0xff]
    %v33 = vld [vmem:[%s0 + $0xa8] sm:$0xff]
    %v34 = vld [vmem:[%s0 + $0xb0] sm:$0xff]
    %v35 = vld [vmem:[%s0 + $0xb8] sm:$0xff]
    %v36 = vld [vmem:[%s0 + $0xc0] sm:$0xff]
    %v37 = vld [vmem:[%s0 + $0xc8] sm:$0xff]
    %v38 = vld [vmem:[%s0 + $0xd0] sm:$0xff]
    %v39 = vld [vmem:[%s0 + $0xd8] sm:$0xff]
    %v40 = vld [vmem:[%s0 + $0xe0] sm:$0xff]
    %v41 = vld [vmem:[%s0 + $0xe8] sm:$0xff]
    %v42 = vld [vmem:[%s0 + $0xf0] sm:$0xff]
    %v43 = vld [vmem:[%s0 + $0xf8] sm:$0xff]
    %v44 = vld [vmem:[%s1] sm:$0xff]
    %v45 = vld [vmem:[%s1 + $0x8] sm:$0xff]
    %v46 = vld [vmem:[%s1 + $0x10] sm:$0xff]
    %v47 = vld [vmem:[%s1 + $0x18] sm:$0xff]
    %vm48 = vcmask 261120
    %v50 = vsel %vm48, %v12, 0
    %v53 = vsel %vm48, %v13, 0
    %v56 = vsel %vm48, %v14, 0
    %v59 = vsel %vm48, %v15, 0
    %v62 = vsel %vm48, %v16, 0
    %v65 = vsel %vm48, %v17, 0
    %v68 = vsel %vm48, %v18, 0
    %v71 = vsel %vm48, %v19, 0
    %v74 = vsel %vm48, %v20, 0
    %v77 = vsel %vm48, %v21, 0
    %v80 = vsel %vm48, %v22, 0
    %v83 = vsel %vm48, %v23, 0
    %v86 = vsel %vm48, %v24, 0
    %v89 = vsel %vm48, %v25, 0
    %v92 = vsel %vm48, %v26, 0
    %v95 = vsel %vm48, %v27, 0
    %v98 = vsel %vm48, %v28, 0
    %v101 = vsel %vm48, %v29, 0
    %v104 = vsel %vm48, %v30, 0
    %v107 = vsel %vm48, %v31, 0
    %v110 = vsel %vm48, %v32, 0
    %v113 = vsel %vm48, %v33, 0
    %v116 = vsel %vm48, %v34, 0
    %v119 = vsel %vm48, %v35, 0
    %v122 = vsel %vm48, %v36, 0
    %v125 = vsel %vm48, %v37, 0
    %v128 = vsel %vm48, %v38, 0
    %v131 = vsel %vm48, %v39, 0
    %v134 = vsel %vm48, %v40, 0
    %v137 = vsel %vm48, %v41, 0
    %v140 = vsel %vm48, %v42, 0
    %v143 = vsel %vm48, %v43, 0
    %145 = vmatprep.subr.mxu0 0.0
    %146 = vmatpush1.msra.mxu0 0.0
    %147 = vmatprep.subr.mxu0 0.0
    %148 = vmatpush1.msra.mxu0 0.0
    %149 = vmatprep.subr.mxu0 0.0
    %150 = vmatpush1.msra.mxu0 0.0
    %151 = vmatprep.subr.mxu0 0.0
    %152 = vmatpush1.msra.mxu0 0.0
    %153 = vmatprep.subr.mxu0 0.0
    %154 = vmatpush1.msra.mxu0 0.0
    %155 = vmatprep.subr.mxu0 0.0
    %156 = vmatpush1.msra.mxu0 0.0
    %157 = vmatprep.subr.mxu0 0.0
    %158 = vmatpush1.msra.mxu0 0.0
    %159 = vmatprep.subr.mxu0 0.0
    %160 = vmatpush1.msra.mxu0 0.0
    %161 = vmatprep.subr.mxu0 0.0
    %162 = vmatpush1.msra.mxu0 0.0
    %163 = vmatprep.subr.mxu0 0.0
    %164 = vmatpush1.msra.mxu0 0.0
    %165 = vmatprep.subr.mxu0 0.0
    %166 = vmatpush1.msra.mxu0 0.0
    %167 = vmatprep.subr.mxu0 0.0
    %168 = vmatpush1.msra.mxu0 0.0
    %169 = vmatprep.subr.mxu0 0.0
    %170 = vmatpush1.msra.mxu0 %v47
    %171 = vmatprep.subr.mxu0 0.0
    %172 = vmatpush1.msra.mxu0 %v46
    %173 = vmatprep.subr.mxu0 0.0
    %174 = vmatpush1.msra.mxu0 %v45
    %175 = vmatprep.subr.mxu0 0.0
    %176 = vmatpush1.msra.mxu0 %v44
    %177 = vmatprep.subr.mxu0 0.0
    %178 = vmatpush2.msra.mxu0 0.0
    %179 = vmatprep.subr.mxu0 0.0
    %180 = vmatpush2.msra.mxu0 0.0
    %181 = vmatprep.subr.mxu0 0.0
    %182 = vmatpush2.msra.mxu0 0.0
    %183 = vmatprep.subr.mxu0 0.0
    %184 = vmatpush2.msra.mxu0 0.0
    %185 = vmatprep.subr.mxu0 0.0
    %186 = vmatpush2.msra.mxu0 0.0
    %187 = vmatprep.subr.mxu0 0.0
    %188 = vmatpush2.msra.mxu0 0.0
    %189 = vmatprep.subr.mxu0 0.0
    %190 = vmatpush2.msra.mxu0 0.0
    %191 = vmatprep.subr.mxu0 0.0
    %192 = vmatpush2.msra.mxu0 0.0
    %193 = vmatprep.subr.mxu0 0.0
    %194 = vmatpush2.msra.mxu0 0.0
    %195 = vmatprep.subr.mxu0 0.0
    %196 = vmatpush2.msra.mxu0 0.0
    %197 = vmatprep.subr.mxu0 0.0
    %198 = vmatpush2.msra.mxu0 0.0
    %199 = vmatprep.subr.mxu0 0.0
    %200 = vmatpush2.msra.mxu0 0.0
    %201 = vmatprep.subr.mxu0 0.0
    %202 = vmatpush2.msra.mxu0 0.0
    %203 = vmatprep.subr.mxu0 0.0
    %204 = vmatpush2.msra.mxu0 0.0
    %205 = vmatprep.subr.mxu0 0.0
    %206 = vmatpush2.msra.mxu0 0.0
    %207 = vmatprep.subr.mxu0 0.0
    %208 = vmatpush2.msra.mxu0 0.0
    %209 = vmatprep.mubr.f32.mxu0 0.0
    %210 = vmatmul.mubr.f32.gmra.mxu0 %v50
    %v211 = vpop.f32.mrf.mxu0
    %v212 = vadd.f32 0.0, %v211
    %v213 = vpop.f32.mrf.mxu0
    %214 = vmatprep.mubr.f32.mxu0 0.0
    %215 = vmatmul.mubr.f32.gmra.mxu0 %v53
    %v216 = vpop.f32.mrf.mxu0
    %v217 = vadd.f32 0.0, %v216
    %v218 = vpop.f32.mrf.mxu0
    %219 = vmatprep.mubr.f32.mxu0 0.0
    %220 = vmatmul.mubr.f32.gmra.mxu0 %v56
    %v221 = vpop.f32.mrf.mxu0
    %v222 = vadd.f32 0.0, %v221
    %v223 = vpop.f32.mrf.mxu0
    %224 = vmatprep.mubr.f32.mxu0 0.0
    %225 = vmatmul.mubr.f32.gmra.mxu0 %v59
    %v226 = vpop.f32.mrf.mxu0
    %v227 = vadd.f32 0.0, %v226
    %v228 = vpop.f32.mrf.mxu0
    %229 = vmatprep.mubr.f32.mxu0 0.0
    %230 = vmatmul.mubr.f32.gmra.mxu0 %v62
    %v231 = vpop.f32.mrf.mxu0
    %v232 = vadd.f32 0.0, %v231
    %v233 = vpop.f32.mrf.mxu0
    %234 = vmatprep.mubr.f32.mxu0 0.0
    %235 = vmatmul.mubr.f32.gmra.mxu0 %v65
    %v236 = vpop.f32.mrf.mxu0
    %v237 = vadd.f32 0.0, %v236
    %v238 = vpop.f32.mrf.mxu0
    %239 = vmatprep.mubr.f32.mxu0 0.0
    %240 = vmatmul.mubr.f32.gmra.mxu0 %v68
    %v241 = vpop.f32.mrf.mxu0
    %v242 = vadd.f32 0.0, %v241
    %v243 = vpop.f32.mrf.mxu0
    %244 = vmatprep.mubr.f32.mxu0 0.0
    %245 = vmatmul.mubr.f32.gmra.mxu0 %v71
    %v246 = vpop.f32.mrf.mxu0
    %v247 = vadd.f32 0.0, %v246
    %v248 = vpop.f32.mrf.mxu0
    %249 = vmatprep.mubr.f32.mxu0 0.0
    %250 = vmatmul.mubr.f32.gmra.mxu0 %v74
    %v251 = vpop.f32.mrf.mxu0
    %v252 = vadd.f32 0.0, %v251
    %v253 = vpop.f32.mrf.mxu0
    %254 = vmatprep.mubr.f32.mxu0 0.0
    %255 = vmatmul.mubr.f32.gmra.mxu0 %v77
    %v256 = vpop.f32.mrf.mxu0
    %v257 = vadd.f32 0.0, %v256
    %v258 = vpop.f32.mrf.mxu0
    %259 = vmatprep.mubr.f32.mxu0 0.0
    %260 = vmatmul.mubr.f32.gmra.mxu0 %v80
    %v261 = vpop.f32.mrf.mxu0
    %v262 = vadd.f32 0.0, %v261
    %v263 = vpop.f32.mrf.mxu0
    %264 = vmatprep.mubr.f32.mxu0 0.0
    %265 = vmatmul.mubr.f32.gmra.mxu0 %v83
    %v266 = vpop.f32.mrf.mxu0
    %v267 = vadd.f32 0.0, %v266
    %v268 = vpop.f32.mrf.mxu0
    %269 = vmatprep.mubr.f32.mxu0 0.0
    %270 = vmatmul.mubr.f32.gmra.mxu0 %v86
    %v271 = vpop.f32.mrf.mxu0
    %v272 = vadd.f32 0.0, %v271
    %v273 = vpop.f32.mrf.mxu0
    %274 = vmatprep.mubr.f32.mxu0 0.0
    %275 = vmatmul.mubr.f32.gmra.mxu0 %v89
    %v276 = vpop.f32.mrf.mxu0
    %v277 = vadd.f32 0.0, %v276
    %v278 = vpop.f32.mrf.mxu0
    %279 = vmatprep.mubr.f32.mxu0 0.0
    %280 = vmatmul.mubr.f32.gmra.mxu0 %v92
    %v281 = vpop.f32.mrf.mxu0
    %v282 = vadd.f32 0.0, %v281
    %v283 = vpop.f32.mrf.mxu0
    %284 = vmatprep.mubr.f32.mxu0 0.0
    %285 = vmatmul.mubr.f32.gmra.mxu0 %v95
    %v286 = vpop.f32.mrf.mxu0
    %v287 = vadd.f32 0.0, %v286
    %v288 = vpop.f32.mrf.mxu0
    %289 = vmatprep.mubr.f32.mxu0 0.0
    %290 = vmatmul.mubr.f32.gmra.mxu0 %v98
    %v291 = vpop.f32.mrf.mxu0
    %v292 = vadd.f32 0.0, %v291
    %v293 = vpop.f32.mrf.mxu0
    %294 = vmatprep.mubr.f32.mxu0 0.0
    %295 = vmatmul.mubr.f32.gmra.mxu0 %v101
    %v296 = vpop.f32.mrf.mxu0
    %v297 = vadd.f32 0.0, %v296
    %v298 = vpop.f32.mrf.mxu0
    %299 = vmatprep.mubr.f32.mxu0 0.0
    %300 = vmatmul.mubr.f32.gmra.mxu0 %v104
    %v301 = vpop.f32.mrf.mxu0
    %v302 = vadd.f32 0.0, %v301
    %v303 = vpop.f32.mrf.mxu0
    %304 = vmatprep.mubr.f32.mxu0 0.0
    %305 = vmatmul.mubr.f32.gmra.mxu0 %v107
    %v306 = vpop.f32.mrf.mxu0
    %v307 = vadd.f32 0.0, %v306
    %v308 = vpop.f32.mrf.mxu0
    %309 = vmatprep.mubr.f32.mxu0 0.0
    %310 = vmatmul.mubr.f32.gmra.mxu0 %v110
    %v311 = vpop.f32.mrf.mxu0
    %v312 = vadd.f32 0.0, %v311
    %v313 = vpop.f32.mrf.mxu0
    %314 = vmatprep.mubr.f32.mxu0 0.0
    %315 = vmatmul.mubr.f32.gmra.mxu0 %v113
    %v316 = vpop.f32.mrf.mxu0
    %v317 = vadd.f32 0.0, %v316
    %v318 = vpop.f32.mrf.mxu0
    %319 = vmatprep.mubr.f32.mxu0 0.0
    %320 = vmatmul.mubr.f32.gmra.mxu0 %v116
    %v321 = vpop.f32.mrf.mxu0
    %v322 = vadd.f32 0.0, %v321
    %v323 = vpop.f32.mrf.mxu0
    %324 = vmatprep.mubr.f32.mxu0 0.0
    %325 = vmatmul.mubr.f32.gmra.mxu0 %v119
    %v326 = vpop.f32.mrf.mxu0
    %v327 = vadd.f32 0.0, %v326
    %v328 = vpop.f32.mrf.mxu0
    %329 = vmatprep.mubr.f32.mxu0 0.0
    %330 = vmatmul.mubr.f32.gmra.mxu0 %v122
    %v331 = vpop.f32.mrf.mxu0
    %v332 = vadd.f32 0.0, %v331
    %v333 = vpop.f32.mrf.mxu0
    %334 = vmatprep.mubr.f32.mxu0 0.0
    %335 = vmatmul.mubr.f32.gmra.mxu0 %v125
    %v336 = vpop.f32.mrf.mxu0
    %v337 = vadd.f32 0.0, %v336
    %v338 = vpop.f32.mrf.mxu0
    %339 = vmatprep.mubr.f32.mxu0 0.0
    %340 = vmatmul.mubr.f32.gmra.mxu0 %v128
    %v341 = vpop.f32.mrf.mxu0
    %v342 = vadd.f32 0.0, %v341
    %v343 = vpop.f32.mrf.mxu0
    %344 = vmatprep.mubr.f32.mxu0 0.0
    %345 = vmatmul.mubr.f32.gmra.mxu0 %v131
    %v346 = vpop.f32.mrf.mxu0
    %v347 = vadd.f32 0.0, %v346
    %v348 = vpop.f32.mrf.mxu0
    %349 = vmatprep.mubr.f32.mxu0 0.0
    %350 = vmatmul.mubr.f32.gmra.mxu0 %v134
    %v351 = vpop.f32.mrf.mxu0
    %v352 = vadd.f32 0.0, %v351
    %v353 = vpop.f32.mrf.mxu0
    %354 = vmatprep.mubr.f32.mxu0 0.0
    %355 = vmatmul.mubr.f32.gmra.mxu0 %v137
    %v356 = vpop.f32.mrf.mxu0
    %v357 = vadd.f32 0.0, %v356
    %v358 = vpop.f32.mrf.mxu0
    %359 = vmatprep.mubr.f32.mxu0 0.0
    %360 = vmatmul.mubr.f32.gmra.mxu0 %v140
    %v361 = vpop.f32.mrf.mxu0
    %v362 = vadd.f32 0.0, %v361
    %v363 = vpop.f32.mrf.mxu0
    %364 = vmatprep.mubr.f32.mxu0 0.0
    %365 = vmatmul.mubr.f32.gmra.mxu0 %v143
    %v366 = vpop.f32.mrf.mxu0
    %v367 = vadd.f32 0.0, %v366
    %v368 = vpop.f32.mrf.mxu0
    %369 = vdwg.mxu0
    %370 = vst [vmem:[#allocation2] sm:$0xff] %v212
    %371 = vst [vmem:[#allocation2 + $0x8] sm:$0xff] %v217
    %372 = vst [vmem:[#allocation2 + $0x10] sm:$0xff] %v222
    %373 = vst [vmem:[#allocation2 + $0x18] sm:$0xff] %v227
    %374 = vst [vmem:[#allocation2 + $0x20] sm:$0xff] %v232
    %375 = vst [vmem:[#allocation2 + $0x28] sm:$0xff] %v237
    %376 = vst [vmem:[#allocation2 + $0x30] sm:$0xff] %v242
    %377 = vst [vmem:[#allocation2 + $0x38] sm:$0xff] %v247
    %378 = vst [vmem:[#allocation2 + $0x40] sm:$0xff] %v252
    %379 = vst [vmem:[#allocation2 + $0x48] sm:$0xff] %v257
    %380 = vst [vmem:[#allocation2 + $0x50] sm:$0xff] %v262
    %381 = vst [vmem:[#allocation2 + $0x58] sm:$0xff] %v267
    %382 = vst [vmem:[#allocation2 + $0x60] sm:$0xff] %v272
    %383 = vst [vmem:[#allocation2 + $0x68] sm:$0xff] %v277
    %384 = vst [vmem:[#allocation2 + $0x70] sm:$0xff] %v282
    %385 = vst [vmem:[#allocation2 + $0x78] sm:$0xff] %v287
    %386 = vst [vmem:[#allocation2 + $0x80] sm:$0xff] %v292
    %387 = vst [vmem:[#allocation2 + $0x88] sm:$0xff] %v297
    %388 = vst [vmem:[#allocation2 + $0x90] sm:$0xff] %v302
    %389 = vst [vmem:[#allocation2 + $0x98] sm:$0xff] %v307
    %390 = vst [vmem:[#allocation2 + $0xa0] sm:$0xff] %v312
    %391 = vst [vmem:[#allocation2 + $0xa8] sm:$0xff] %v317
    %392 = vst [vmem:[#allocation2 + $0xb0] sm:$0xff] %v322
    %393 = vst [vmem:[#allocation2 + $0xb8] sm:$0xff] %v327
    %394 = vst [vmem:[#allocation2 + $0xc0] sm:$0xff] %v332
    %395 = vst [vmem:[#allocation2 + $0xc8] sm:$0xff] %v337
    %396 = vst [vmem:[#allocation2 + $0xd0] sm:$0xff] %v342
    %397 = vst [vmem:[#allocation2 + $0xd8] sm:$0xff] %v347
    %398 = vst [vmem:[#allocation2 + $0xe0] sm:$0xff] %v352
    %399 = vst [vmem:[#allocation2 + $0xe8] sm:$0xff] %v357
    %400 = vst [vmem:[#allocation2 + $0xf0] sm:$0xff] %v362
    %401 = vst [vmem:[#allocation2 + $0xf8] sm:$0xff] %v367
    // Predicated region
    $region10: #{tpu_custom_call.1} parent=1 // pred_check
      _
    $region11: #{tpu_custom_call.1} parent=1 // pred_check_branch
      %403 = sbr.rel (0) target = $region13
    $region12: #{tpu_custom_call.1} parent=1 // pred_region
      %s405 = ssub.s32 4096, 4096
      %406 = vsyncadd [#allocation3], %s405
      %s407 = sshll.u32 [#allocation2], 4
      %s408 = int_to_ptr.vmem [resolvable:$true] %s407
      %413 = dma.vmem_to_hbm [thread:$0]  %s408, 4096, %s2, [#allocation3], 128, 128, 8
    $region13: #{tpu_custom_call.1} parent=1 // pred_fallthru
      _
    // Predicated region
    $region14: #{tpu_custom_call.1} parent=1 // pred_check
      _
    $region15: #{tpu_custom_call.1} parent=1 // pred_check_branch
      %415 = sbr.rel (0) target = $region17
    $region16: #{tpu_custom_call.1} parent=1 // pred_region
      %416 = dma.done [#allocation3], 4096
    $region17: #{tpu_custom_call.1} parent=1 // pred_fallthru
      _
    %417 = vsyncpa [#allocation3], 1

</llo_original>
